<compile_context>
chip_gen: v5e
topology: v5e:2x2
jax: 0.10.0
libtpu: 0.0.40
codegen_flags: <defaults>
</compile_context>

<pallas_src>
import jax
import jax.numpy as jnp
from jax.experimental import pallas as pl
from jax.experimental.pallas import tpu as pltpu


_TB_MAX = 1024  # batch rows (lanes) per grid step, re-derived for v7x 64 MiB VMEM


def _round_up(n, m):
    return ((n + m - 1) // m) * m


def _valuenet_kernel(cat_ref, w1_ref, b1_ref, w2_ref, b2_ref, w3_ref, b3_ref,
                     out_ref):
    """One batch tile: out[1, TB] = MLP(cat_t[S+A, TB]), computed transposed."""
    # Layer 1: h1 = relu(W1 @ cat_t + b1)              -> [H, TB]
    # bf16 MXU operands, f32 accumulation; bias/ReLU in f32.
    cat_bf = cat_ref[...].astype(jnp.bfloat16)
    z1 = jnp.dot(w1_ref[...], cat_bf, preferred_element_type=jnp.float32)
    h1 = jnp.maximum(z1 + b1_ref[...], 0.0)

    # Layer 2: h2 = relu(W2 @ h1 + b2)                 -> [H2, TB]
    z2 = jnp.dot(w2_ref[...], h1.astype(jnp.bfloat16),
                 preferred_element_type=jnp.float32)
    h2 = jnp.maximum(z2 + b2_ref[...], 0.0)

    # Layer 3: out = W3 . h2 + b3                      -> [1, TB]
    # Broadcast-multiply + sublane reduce (VPU/XLU) instead of an M=1 matmul;
    # result is a lane-dense [1, TB] row.
    out = jnp.sum(h2 * w3_ref[...], axis=0, keepdims=True) + b3_ref[...]
    out_ref[...] = out.astype(out_ref.dtype)


def value_net_forward(x, a, params):
    """x: [B, state_dim], a: [B, action_dim] -> [B, 1] (matches the nn.Module)."""
    w1, b1, w2, b2, w3, b3 = params
    B, S = x.shape
    A = a.shape[1]
    SA = S + A
    H = w1.shape[0]
    H2 = w2.shape[0]

    # Feature-major activations: [S+A, B].  The concat of two tiny transposed
    # arrays replaces materializing a [B, S+A] tensor and keeps every kernel
    # load lane-dense along the batch axis.
    x_t = x.astype(jnp.float32).T                       # [S, B]
    a_t = a.astype(jnp.float32).T                       # [A, B]
    cat_t = jnp.concatenate([x_t, a_t], axis=0)         # [S+A, B]

    # One-time weight prep: PyTorch [out, in] layout is already what the
    # transposed kernel wants; MXU operands go to bf16, biases stay f32.
    w1_bf = w1.astype(jnp.bfloat16)                     # [H, S+A]
    b1c = b1.reshape(H, 1).astype(jnp.float32)          # [H, 1]
    w2_bf = w2.astype(jnp.bfloat16)                     # [H2, H]
    b2c = b2.reshape(H2, 1).astype(jnp.float32)         # [H2, 1]
    w3c = w3.reshape(H2, 1).astype(jnp.float32)         # [H2, 1]
    b3c = b3.reshape(1, 1).astype(jnp.float32)          # [1, 1]

    # Batch tile selection:
    #   * small B: one block, block == full dims (sidesteps the (8,128) rule).
    #   * B >= 256: at least 2 lane-aligned (multiple-of-128) tiles so the
    #     "parallel" axis can be sharded across both v7x TensorCores, capped
    #     at _TB_MAX to bound the [H, TB] f32 intermediates in VMEM.
    if B >= 256:
        tb = min(_TB_MAX, _round_up(pl.cdiv(B, 2), 128))
    else:
        tb = B
    grid = (pl.cdiv(B, tb),)

    resident = lambda i: (0, 0)  # weights/biases fetched once, stay in VMEM

    cost = pl.CostEstimate(
        flops=2 * B * (SA * H + H * H2 + H2),
        transcendentals=0,
        bytes_accessed=(cat_t.size * 4 + w1_bf.size * 2 + w2_bf.size * 2
                        + (H + H2 + H2 + 1) * 4 + B * 4),
    )

    out_t = pl.pallas_call(
        _valuenet_kernel,
        out_shape=jax.ShapeDtypeStruct((1, B), jnp.float32),
        grid=grid,
        in_specs=[
            pl.BlockSpec((SA, tb), lambda i: (0, i)),   # cat_t tile (lane-dense)
            pl.BlockSpec((H, SA), resident),            # W1 (bf16)
            pl.BlockSpec((H, 1), resident),             # b1
            pl.BlockSpec((H2, H), resident),            # W2 (bf16)
            pl.BlockSpec((H2, 1), resident),            # b2
            pl.BlockSpec((H2, 1), resident),            # W3 (column, f32)
            pl.BlockSpec((1, 1), resident),             # b3
        ],
        out_specs=pl.BlockSpec((1, tb), lambda i: (0, i)),
        compiler_params=pltpu.CompilerParams(
            dimension_semantics=("parallel",),
            vmem_limit_bytes=32 * 1024 * 1024,
        ),
        cost_estimate=cost,
    )(cat_t, w1_bf, b1c, w2_bf, b2c, w3c, b3c)

    # [1, B] -> [B, 1]: same row-major element order, effectively free.
    return out_t.reshape(B, 1)


def init_params(key, state_dim, hidden_dim, action_dim):
    """Deterministic PyTorch-Linear-style init: U(-1/sqrt(fan_in), 1/sqrt(fan_in))."""
    dims = [(state_dim + action_dim, hidden_dim),
            (hidden_dim, hidden_dim // 2),
            (hidden_dim // 2, 1)]
    params = []
    for (fan_in, fan_out) in dims:
        key, kw, kb = jax.random.split(key, 3)
        bound = 1.0 / jnp.sqrt(float(fan_in))
        # PyTorch weight layout: [out, in]
        w = jax.random.uniform(kw, (fan_out, fan_in), jnp.float32, -bound, bound)
        b = jax.random.uniform(kb, (fan_out,), jnp.float32, -bound, bound)
        params.extend([w, b])
    return tuple(params)


if __name__ == "__main__":
    state_dim, hidden_dim, action_dim = 8, 32, 4
    batch = 2

    key = jax.random.PRNGKey(0)
    key, kx, ka = jax.random.split(key, 3)
    x = jax.random.normal(kx, (batch, state_dim), jnp.float32)
    a = jax.random.normal(ka, (batch, action_dim), jnp.float32)

    params = init_params(key, state_dim, hidden_dim, action_dim)

    out = value_net_forward(x, a, params)
    jax.block_until_ready(out)

    # Pure-JAX f32 reference of the same math (PyTorch semantics).
    w1, b1, w2, b2, w3, b3 = params
    cat = jnp.concatenate([x, a], axis=1)
    ref = jnp.maximum(cat @ w1.T + b1, 0.0)
    ref = jnp.maximum(ref @ w2.T + b2, 0.0)
    ref = ref @ w3.T + b3

    assert out.shape == (batch, 1)
    # Tolerance loosened vs. the f32 reference because MXU operands are bf16
    # (f32 accumulation keeps the error at the ~1e-2 level for these scales).
    assert jnp.allclose(out, ref, atol=5e-2, rtol=5e-2), (out, ref)

    print("KERNEL_OK")
</pallas_src>

<mosaic_0001>
module attributes {stable_mosaic.version = 11 : i64} {
  func.func @_valuenet_kernel(%arg0: i32, %arg1: memref<12x2xf32, #tpu.memory_space<vmem>>, %arg2: memref<32x12xbf16, #tpu.memory_space<vmem>>, %arg3: memref<32x1xf32, #tpu.memory_space<vmem>>, %arg4: memref<16x32xbf16, #tpu.memory_space<vmem>>, %arg5: memref<16x1xf32, #tpu.memory_space<vmem>>, %arg6: memref<16x1xf32, #tpu.memory_space<vmem>>, %arg7: memref<1x1xf32, #tpu.memory_space<vmem>>, %arg8: memref<1x2xf32, #tpu.memory_space<vmem>>) attributes {dimension_semantics = [#tpu.dimension_semantics<parallel>], iteration_bounds = array<i64: 1>, scalar_prefetch = 0 : i64, scratch_operands = 0 : i64, tpu.core_type = #tpu.core_type<tc>, window_params = [{transform_indices = @transform_0, window_bounds = array<i64: 12, 2>}, {pipeline_mode = #tpu.pipeline_mode<synchronous>, transform_indices = @transform_1, window_bounds = array<i64: 32, 12>}, {pipeline_mode = #tpu.pipeline_mode<synchronous>, transform_indices = @transform_2, window_bounds = array<i64: 32, 1>}, {pipeline_mode = #tpu.pipeline_mode<synchronous>, transform_indices = @transform_3, window_bounds = array<i64: 16, 32>}, {pipeline_mode = #tpu.pipeline_mode<synchronous>, transform_indices = @transform_4, window_bounds = array<i64: 16, 1>}, {pipeline_mode = #tpu.pipeline_mode<synchronous>, transform_indices = @transform_5, window_bounds = array<i64: 16, 1>}, {pipeline_mode = #tpu.pipeline_mode<synchronous>, transform_indices = @transform_6, window_bounds = array<i64: 1, 1>}, {transform_indices = @transform_7, window_bounds = array<i64: 1, 2>}]} {
    %c0 = arith.constant 0 : index
    %c0_0 = arith.constant 0 : index
    %0 = vector.load %arg1[%c0, %c0_0] : memref<12x2xf32, #tpu.memory_space<vmem>>, vector<12x2xf32>
    %1 = arith.truncf %0 : vector<12x2xf32> to vector<12x2xbf16>
    %c0_1 = arith.constant 0 : index
    %c0_2 = arith.constant 0 : index
    %2 = vector.load %arg2[%c0_1, %c0_2] : memref<32x12xbf16, #tpu.memory_space<vmem>>, vector<32x12xbf16>
    %cst = arith.constant dense<0.000000e+00> : vector<32x2xf32>
    %3 = tpu.matmul %2, %1, %cst {dimension_numbers = #tpu.dot_dimension_numbers<[1], [0], [0], [1], [0, 0, 1, 1], [], []>} : vector<32x12xbf16>, vector<12x2xbf16>, vector<32x2xf32> -> vector<32x2xf32>
    %c0_3 = arith.constant 0 : index
    %c0_4 = arith.constant 0 : index
    %4 = vector.load %arg3[%c0_3, %c0_4] : memref<32x1xf32, #tpu.memory_space<vmem>>, vector<32x1xf32>
    %5 = vector.broadcast %4 : vector<32x1xf32> to vector<32x2xf32>
    %6 = arith.addf %3, %5 : vector<32x2xf32>
    %cst_5 = arith.constant 0.000000e+00 : f32
    %7 = vector.broadcast %cst_5 : f32 to vector<32x2xf32>
    %8 = arith.maximumf %6, %7 : vector<32x2xf32>
    %c0_6 = arith.constant 0 : index
    %c0_7 = arith.constant 0 : index
    %9 = vector.load %arg4[%c0_6, %c0_7] : memref<16x32xbf16, #tpu.memory_space<vmem>>, vector<16x32xbf16>
    %10 = arith.truncf %8 : vector<32x2xf32> to vector<32x2xbf16>
    %cst_8 = arith.constant dense<0.000000e+00> : vector<16x2xf32>
    %11 = tpu.matmul %9, %10, %cst_8 {dimension_numbers = #tpu.dot_dimension_numbers<[1], [0], [0], [1], [0, 0, 1, 1], [], []>} : vector<16x32xbf16>, vector<32x2xbf16>, vector<16x2xf32> -> vector<16x2xf32>
    %c0_9 = arith.constant 0 : index
    %c0_10 = arith.constant 0 : index
    %12 = vector.load %arg5[%c0_9, %c0_10] : memref<16x1xf32, #tpu.memory_space<vmem>>, vector<16x1xf32>
    %13 = vector.broadcast %12 : vector<16x1xf32> to vector<16x2xf32>
    %14 = arith.addf %11, %13 : vector<16x2xf32>
    %cst_11 = arith.constant 0.000000e+00 : f32
    %15 = vector.broadcast %cst_11 : f32 to vector<16x2xf32>
    %16 = arith.maximumf %14, %15 : vector<16x2xf32>
    %c0_12 = arith.constant 0 : index
    %c0_13 = arith.constant 0 : index
    %17 = vector.load %arg6[%c0_12, %c0_13] : memref<16x1xf32, #tpu.memory_space<vmem>>, vector<16x1xf32>
    %18 = vector.broadcast %17 : vector<16x1xf32> to vector<16x2xf32>
    %19 = arith.mulf %16, %18 : vector<16x2xf32>
    %cst_14 = arith.constant dense<0.000000e+00> : vector<2xf32>
    %20 = vector.multi_reduction <add>, %19, %cst_14 [0] : vector<16x2xf32> to vector<2xf32>
    %21 = vector.shape_cast %20 : vector<2xf32> to vector<1x2xf32>
    %c0_15 = arith.constant 0 : index
    %c0_16 = arith.constant 0 : index
    %22 = vector.load %arg7[%c0_15, %c0_16] : memref<1x1xf32, #tpu.memory_space<vmem>>, vector<1x1xf32>
    %23 = vector.broadcast %22 : vector<1x1xf32> to vector<1x2xf32>
    %24 = arith.addf %21, %23 : vector<1x2xf32>
    %c0_17 = arith.constant 0 : index
    %c0_18 = arith.constant 0 : index
    %25 = vector.load %arg8[%c0_17, %c0_18] : memref<1x2xf32, #tpu.memory_space<vmem>>, vector<1x2xf32>
    tpu.vector_store %arg8[%c0_17, %c0_18], %24 {strides = array<i32>} : memref<1x2xf32, #tpu.memory_space<vmem>>, vector<1x2xf32>,
    return
  }
  func.func @transform_0(%arg0: i32) -> (i32, i32) {
    %c0_i32 = arith.constant 0 : i32
    %c0_i32_0 = arith.constant 0 : i32
    return %c0_i32, %arg0 : i32, i32
  }
  func.func @transform_1(%arg0: i32) -> (i32, i32) {
    %c0_i32 = arith.constant 0 : i32
    %c0_i32_0 = arith.constant 0 : i32
    %c0_i32_1 = arith.constant 0 : i32
    return %c0_i32, %c0_i32_0 : i32, i32
  }
  func.func @transform_2(%arg0: i32) -> (i32, i32) {
    %c0_i32 = arith.constant 0 : i32
    %c0_i32_0 = arith.constant 0 : i32
    %c0_i32_1 = arith.constant 0 : i32
    return %c0_i32, %c0_i32_0 : i32, i32
  }
  func.func @transform_3(%arg0: i32) -> (i32, i32) {
    %c0_i32 = arith.constant 0 : i32
    %c0_i32_0 = arith.constant 0 : i32
    %c0_i32_1 = arith.constant 0 : i32
    return %c0_i32, %c0_i32_0 : i32, i32
  }
  func.func @transform_4(%arg0: i32) -> (i32, i32) {
    %c0_i32 = arith.constant 0 : i32
    %c0_i32_0 = arith.constant 0 : i32
    %c0_i32_1 = arith.constant 0 : i32
    return %c0_i32, %c0_i32_0 : i32, i32
  }
  func.func @transform_5(%arg0: i32) -> (i32, i32) {
    %c0_i32 = arith.constant 0 : i32
    %c0_i32_0 = arith.constant 0 : i32
    %c0_i32_1 = arith.constant 0 : i32
    return %c0_i32, %c0_i32_0 : i32, i32
  }
  func.func @transform_6(%arg0: i32) -> (i32, i32) {
    %c0_i32 = arith.constant 0 : i32
    %c0_i32_0 = arith.constant 0 : i32
    %c0_i32_1 = arith.constant 0 : i32
    return %c0_i32, %c0_i32_0 : i32, i32
  }
  func.func @transform_7(%arg0: i32) -> (i32, i32) {
    %c0_i32 = arith.constant 0 : i32
    %c0_i32_0 = arith.constant 0 : i32
    return %c0_i32, %arg0 : i32, i32
  }
}

</mosaic_0001>

<llo_original>
// kernel: tpu_custom_call.1
$region0: #{tpu_custom_call.1}
  #allocation0 [shape = 'u32[]', space=smem, size = 0x4, offset = 0x4, fixed_abs, tag = 'smem constant byte address 0x4 - core index']
  #allocation1 [shape = 'u32[72,128]{1,0:T(1,128)}', space=vmem, size = 0x9000, scoped, tag = 'internal scratch']
  #allocation2 [shape = 'f32[1,1]{1,0:T(1,128)S(1)}', space=vmem, size = 0x200, scoped, tag = 'scoped memory for tpu_custom_call.1']
  %s0 = inlined_call_operand.vmem [shape: f32[12,2], index: 0, kind: input, shape index: {}]
  %s1 = inlined_call_operand.vmem [shape: bf16[32,12], index: 1, kind: input, shape index: {}]
  %s2 = inlined_call_operand.vmem [shape: f32[32,1], index: 2, kind: input, shape index: {}]
  %s3 = inlined_call_operand.vmem [shape: bf16[16,32], index: 3, kind: input, shape index: {}]
  %s4 = inlined_call_operand.vmem [shape: f32[16,1], index: 4, kind: input, shape index: {}]
  %s5 = inlined_call_operand.vmem [shape: f32[16,1], index: 5, kind: input, shape index: {}]
  %s6 = inlined_call_operand.<no memory space> [shape: f32[1,1], index: 6, kind: input, shape index: {}]
  %s7 = inlined_call_operand.hbm [shape: f32[1,2], index: 7, kind: output, shape index: {}]
  %s8 = sld [smem:[#allocation0]]
  $region38: #{tpu_custom_call.1} parent=0
    _
  %s10 = ssub.s32 1, %s8
  %s11 = scalar_select 0, %s10, %s8
  %v12 = vstv %s6
  %13 = vst [vmem:[#allocation2] sm:$0x1] %v12
  $region1: #{tpu_custom_call.1} parent=0
    #allocation3 [shape = 'u8[512]{0}', space=vmem, size = 0x400, scoped, tag = 'output window, operand 0, single buffered']
    #allocation4 [shape = 's32[1]{0}', space=sflag, size = 0x4, scoped, tag = 'scoped memory for tpu_custom_call.1']
    %14 = vsyncpa [#allocation4], 0
    // Predicated region
    $region2: #{tpu_custom_call.1} parent=1 // pred_check
      _
    $region3: #{tpu_custom_call.1} parent=1 // pred_check_branch
      %16 = sbr.rel (0) target = $region5
    $region4: #{tpu_custom_call.1} parent=1 // pred_region
      _
    $region5: #{tpu_custom_call.1} parent=1 // pred_fallthru
      _
    // Predicated region
    $region6: #{tpu_custom_call.1} parent=1 // pred_check
      _
    $region7: #{tpu_custom_call.1} parent=1 // pred_check_branch
      %18 = sbr.rel (0) target = $region9
    $region8: #{tpu_custom_call.1} parent=1 // pred_region
      _
    $region9: #{tpu_custom_call.1} parent=1 // pred_fallthru
      _
    // Predicated region
    $region10: #{tpu_custom_call.1} parent=1 // pred_check
      _
    $region11: #{tpu_custom_call.1} parent=1 // pred_check_branch
      %20 = sbr.rel (0) target = $region13
    $region12: #{tpu_custom_call.1} parent=1 // pred_region
      _
    $region13: #{tpu_custom_call.1} parent=1 // pred_fallthru
      _
    // Predicated region
    $region14: #{tpu_custom_call.1} parent=1 // pred_check
      _
    $region15: #{tpu_custom_call.1} parent=1 // pred_check_branch
      %22 = sbr.rel (0) target = $region17
    $region16: #{tpu_custom_call.1} parent=1 // pred_region
      _
    $region17: #{tpu_custom_call.1} parent=1 // pred_fallthru
      _
    // Predicated region
    $region18: #{tpu_custom_call.1} parent=1 // pred_check
      _
    $region19: #{tpu_custom_call.1} parent=1 // pred_check_branch
      %24 = sbr.rel (0) target = $region21
    $region20: #{tpu_custom_call.1} parent=1 // pred_region
      _
    $region21: #{tpu_custom_call.1} parent=1 // pred_fallthru
      _
    // Predicated region
    $region22: #{tpu_custom_call.1} parent=1 // pred_check
      _
    $region23: #{tpu_custom_call.1} parent=1 // pred_check_branch
      %26 = sbr.rel (0) target = $region25
    $region24: #{tpu_custom_call.1} parent=1 // pred_region
      _
    $region25: #{tpu_custom_call.1} parent=1 // pred_fallthru
      _
    // Predicated region
    $region26: #{tpu_custom_call.1} parent=1 // pred_check
      _
    $region27: #{tpu_custom_call.1} parent=1 // pred_check_branch
      %28 = sbr.rel (0) target = $region29
    $region28: #{tpu_custom_call.1} parent=1 // pred_region
      _
    $region29: #{tpu_custom_call.1} parent=1 // pred_fallthru
      _
    %v30 = vld [vmem:[%s0] sm:$0xff]
    %v31 = vld [vmem:[%s0 + $0x8] sm:$0xf]
    %v32 = vpack.c.bf16 %v31, %v30
    %v33 = vld [vmem:[%s1] sm:$0xf]
    %v34 = vld [vmem:[%s1 + $0x4] sm:$0xf]
    %v35 = vld [vmem:[%s1 + $0x8] sm:$0xf]
    %v36 = vld [vmem:[%s1 + $0xc] sm:$0xf]
    %v37 = vld [vmem:[%s2] sm:$0xff]
    %v38 = vld [vmem:[%s2 + $0x8] sm:$0xff]
    %v39 = vld [vmem:[%s2 + $0x10] sm:$0xff]
    %v40 = vld [vmem:[%s2 + $0x18] sm:$0xff]
    %42 = vset.pattern.permute.xlu0 0
    %43 = vperm.xlu0 %42, %v37
    %v44 = vpop.permute.xlu0 %43
    %47 = vset.pattern.permute.xlu0 0
    %48 = vperm.xlu0 %47, %v38
    %v49 = vpop.permute.xlu0 %48
    %52 = vset.pattern.permute.xlu0 0
    %53 = vperm.xlu0 %52, %v39
    %v54 = vpop.permute.xlu0 %53
    %57 = vset.pattern.permute.xlu0 0
    %58 = vperm.xlu0 %57, %v40
    %v59 = vpop.permute.xlu0 %58
    %v65 = vunpack.c.l.b16 %v33
    %v66 = vunpack.c.l.b16 %v34
    %v67 = vunpack.c.l.b16 %v35
    %v68 = vunpack.c.l.b16 %v36
    %v69 = vpack.c.b16 %v66, %v65
    %v70 = vpack.c.b16 %v68, %v67
    %vm71 = vcmask 97280
    %v73 = vsel %vm71, %v69, 0
    %v76 = vsel %vm71, %v70, 0
    %vm78 = vcmask 1045504
    %v80 = vsel %vm78, %v32, 0
    %82 = vmatpush.bf16.msra.mxu0 0
    %83 = vmatpush.bf16.msra.mxu0 0
    %84 = vmatpush.bf16.msra.mxu0 0
    %85 = vmatpush.bf16.msra.mxu0 0
    %86 = vmatpush.bf16.msra.mxu0 0
    %87 = vmatpush.bf16.msra.mxu0 0
    %88 = vmatpush.bf16.msra.mxu0 0
    %89 = vmatpush.bf16.msra.mxu0 %v80
    %90 = vmatmul.bf16.gmra.mxu0 %v73
    %v91 = vpop.f32.mrf.mxu0
    %v92 = vadd.f32 %v44, %v91
    %v93 = vpop.f32.mrf.mxu0
    %v94 = vadd.f32 %v49, %v93
    %95 = vmatmul.bf16.gmra.mxu0 %v76
    %v96 = vpop.f32.mrf.mxu0
    %v97 = vadd.f32 %v54, %v96
    %v98 = vpop.f32.mrf.mxu0
    %v99 = vadd.f32 %v59, %v98
    %100 = vdwg.mxu0
    %v101 = vmax.f32 %v92, 0.0
    %v102 = vmax.f32 %v94, 0.0
    %v103 = vmax.f32 %v97, 0.0
    %v104 = vmax.f32 %v99, 0.0
    %v105 = vld [vmem:[%s3] sm:$0xf]
    %v106 = vld [vmem:[%s3 + $0x4] sm:$0xf]
    %v107 = vpack.c.bf16 %v102, %v101
    %v108 = vpack.c.bf16 %v104, %v103
    %v109 = vld [vmem:[%s4] sm:$0xff]
    %v110 = vld [vmem:[%s4 + $0x8] sm:$0xff]
    %112 = vset.pattern.permute.xlu0 0
    %113 = vperm.xlu0 %112, %v109
    %v114 = vpop.permute.xlu0 %113
    %117 = vset.pattern.permute.xlu0 0
    %118 = vperm.xlu0 %117, %v110
    %v119 = vpop.permute.xlu0 %118
    %v123 = vunpack.c.l.b16 %v105
    %v124 = vunpack.c.l.b16 %v106
    %v125 = vpack.c.b16 %v124, %v123
    %vm126 = vcmask 261120
    %v128 = vsel %vm126, %v125, 0
    %130 = vmatpush.bf16.msra.mxu0 0
    %131 = vmatpush.bf16.msra.mxu0 0
    %132 = vmatpush.bf16.msra.mxu0 0
    %133 = vmatpush.bf16.msra.mxu0 0
    %134 = vmatpush.bf16.msra.mxu0 0
    %135 = vmatpush.bf16.msra.mxu0 0
    %136 = vmatpush.bf16.msra.mxu0 %v108
    %137 = vmatpush.bf16.msra.mxu0 %v107
    %138 = vmatmul.bf16.gmra.mxu0 %v128
    %v139 = vpop.f32.mrf.mxu0
    %v140 = vadd.f32 %v114, %v139
    %v141 = vpop.f32.mrf.mxu0
    %v142 = vadd.f32 %v119, %v141
    %143 = vdwg.mxu0
    %v144 = vmax.f32 %v140, 0.0
    %v145 = vmax.f32 %v142, 0.0
    %v146 = vld [vmem:[%s5] sm:$0xff]
    %v147 = vld [vmem:[%s5 + $0x8] sm:$0xff]
    %149 = vset.pattern.permute.xlu0 0
    %150 = vperm.xlu0 %149, %v146
    %v151 = vpop.permute.xlu0 %150
    %154 = vset.pattern.permute.xlu0 0
    %155 = vperm.xlu0 %154, %v147
    %v156 = vpop.permute.xlu0 %155
    %v158 = vmul.f32 %v144, %v151
    %v159 = vmul.f32 %v145, %v156
    %vm160 = vcmask 15360
    %v161 = vsel %vm160, %v158, 0.0
    %v162 = vsel %vm160, %v159, 0.0
    %v163 = vadd.f32 %v161, %v162
    %v164 = vrot.slane %v163, 4
    %v165 = vadd.f32 %v163, %v164
    %v166 = vrot.slane %v165, 2
    %v167 = vadd.f32 %v165, %v166
    %v168 = vrot.slane %v167, 1
    %v169 = vadd.f32 %v167, %v168
    %v170 = vld [vmem:[#allocation2] sm:$0x1]
    %172 = vset.pattern.permute.xlu0 0
    %173 = vperm.xlu0 %172, %v170
    %v174 = vpop.permute.xlu0 %173
    %v176 = vperm.slane %v174, 0
    %v177 = vadd.f32 %v169, %v176
    %vm178 = vcmask 8192
    %179 = vst.msk [vmem:[#allocation3] sm:$0x1] %vm178, %v177
    // Predicated region
    $region30: #{tpu_custom_call.1} parent=1 // pred_check
      _
    $region31: #{tpu_custom_call.1} parent=1 // pred_check_branch
      %181 = sbr.rel (0) target = $region33
    $region32: #{tpu_custom_call.1} parent=1 // pred_region
      %183 = vsyncadd [#allocation4], 0
      %s185 = sshll.u32 [#allocation3], 4
      %s186 = int_to_ptr.vmem [resolvable:$true] %s185
      %s187 = sshll.u32 %s7, 4
      %s188 = int_to_ptr.hbm [resolvable:$true] %s187
      %190 = dma.vmem_to_hbm [thread:$0]  %s186, 16, %s188, [#allocation4]
    $region33: #{tpu_custom_call.1} parent=1 // pred_fallthru
      _
    // Predicated region
    $region34: #{tpu_custom_call.1} parent=1 // pred_check
      _
    $region35: #{tpu_custom_call.1} parent=1 // pred_check_branch
      %192 = sbr.rel (0) target = $region37
    $region36: #{tpu_custom_call.1} parent=1 // pred_region
      %194 = dma.done [#allocation4], 16
    $region37: #{tpu_custom_call.1} parent=1 // pred_fallthru
      _
    %195 = vsyncpa [#allocation4], 1

</llo_original>
